<compile_context>
chip_gen: v7x
topology: tpu7x:2x2x1
jax: 0.10.0
libtpu: 0.0.40
codegen_flags: <defaults>
</compile_context>

<pallas_src>
import functools

import jax
import jax.numpy as jnp
from jax.experimental import pallas as pl
from jax.experimental.pallas import tpu as pltpu


def mlp_kernel(x_ref, w1_ref, b1_ref, w2_ref, b2_ref, w3_ref, b3_ref, o_ref):
    # hidden1: bf16 MXU matmul, f32 accumulate, f32 bias + sigmoid
    h1 = jnp.dot(x_ref[...], w1_ref[...], preferred_element_type=jnp.float32)
    h1 = jax.nn.sigmoid(h1 + b1_ref[...])
    # hidden2
    h2 = jnp.dot(h1.astype(jnp.bfloat16), w2_ref[...],
                 preferred_element_type=jnp.float32)
    h2 = jax.nn.sigmoid(h2 + b2_ref[...])
    # output head; accumulate in f32, bias in f32
    y = jnp.dot(h2.astype(jnp.bfloat16), w3_ref[...],
                preferred_element_type=jnp.float32)
    o_ref[...] = y + b3_ref[...]


def _round_up(v, m):
    return ((v + m - 1) // m) * m


def _choose_tile_b(batch, requested=512):
    """Pick a batch tile: multiple of 16, minimal padding, >=2 grid steps
    when the batch is big enough (so v7x's two TCs can share the work)."""
    requested = max(16, _round_up(int(requested), 16))
    b16 = max(16, _round_up(int(batch), 16))
    if b16 <= requested:
        if b16 >= 32:                       # split one big tile into two
            return _round_up(b16 // 2, 16)
        return b16
    # batch larger than the requested tile: search multiples of 16 for the
    # tile size (>=128) that minimizes batch padding waste.
    best, best_pad = requested, _round_up(batch, requested) - batch
    t = requested - 16
    while t >= 128:
        pad = _round_up(batch, t) - batch
        if pad < best_pad:
            best, best_pad = t, pad
        t -= 16
    return best


def _pick_vmem_limit():
    """Per-generation VMEM limit: ~75% of physical, clamped to [32, 100] MiB."""
    default = 48 * 1024 * 1024
    try:
        info = pltpu.get_tpu_info()
        cap = None
        for name in ("vmem_capacity_bytes", "vmem_bytes", "vmem_size_bytes"):
            cap = getattr(info, name, None)
            if cap:
                break
        if not cap:
            return default
        limit = int(cap * 0.75)
        return max(32 * 1024 * 1024, min(limit, 100 * 1024 * 1024))
    except Exception:
        return default


def prepare_params(w1, b1, w2, b2, w3, b3):
    """One-time parameter prep: bf16 weight casts + optional lane padding.

    Weights are stored pre-transposed (in, out) so the kernel computes x @ W.
    The output head is only padded to a multiple of 128 lanes when n_output
    is large enough (>=64) for lane-dense stores to beat the extra bytes.
    """
    n_hidden = w1.shape[1]
    n_output = w3.shape[1]
    if n_output % 128 == 0 or n_output < 64:
        w3_p, b3_p = w3, b3
    else:
        n_out_pad = pl.cdiv(n_output, 128) * 128
        w3_p = jnp.zeros((n_hidden, n_out_pad), w3.dtype).at[:, :n_output].set(w3)
        b3_p = jnp.zeros((1, n_out_pad), b3.dtype).at[:, :n_output].set(b3)
    return {
        "w1": w1.astype(jnp.bfloat16), "b1": b1.astype(jnp.float32),
        "w2": w2.astype(jnp.bfloat16), "b2": b2.astype(jnp.float32),
        "w3": w3_p.astype(jnp.bfloat16), "b3": b3_p.astype(jnp.float32),
        "n_output": int(n_output),
    }


@functools.partial(
    jax.jit,
    static_argnames=("tile_b", "n_output", "single_buffer_weights",
                     "vmem_limit_bytes"))
def _mlp_forward_impl(x, w1, b1, w2, b2, w3, b3, *, tile_b, n_output,
                      single_buffer_weights, vmem_limit_bytes):
    batch, n_input = x.shape
    n_hidden = w1.shape[1]
    n_out_pad = w3.shape[1]

    x_bf = x.astype(jnp.bfloat16)
    batch_pad = pl.cdiv(batch, tile_b) * tile_b
    if batch_pad != batch:
        x_bf = jnp.pad(x_bf, ((0, batch_pad - batch), (0, 0)))
    grid = (batch_pad // tile_b,)

    resident = lambda i: (0, 0)  # weights/biases: same block every grid step
    if single_buffer_weights:
        # Invariant blocks: single buffer (no point double-buffering them).
        w_spec = lambda shape: pl.BlockSpec(shape, resident,
                                            pipeline_mode=pl.Buffered(1))
    else:
        w_spec = lambda shape: pl.BlockSpec(shape, resident)

    # advisory cost estimate for the XLA scheduler
    flops = 2 * batch_pad * (n_input * n_hidden
                             + n_hidden * n_hidden
                             + n_hidden * n_out_pad)
    bytes_accessed = (batch_pad * n_input * 2          # x (bf16)
                      + batch_pad * n_out_pad * 4      # out (f32)
                      + (n_input * n_hidden + n_hidden * n_hidden
                         + n_hidden * n_out_pad) * 2   # weights (bf16)
                      + (2 * n_hidden + n_out_pad) * 4)  # biases (f32)
    cost = pl.CostEstimate(flops=flops,
                           transcendentals=2 * batch_pad * n_hidden,
                           bytes_accessed=bytes_accessed)

    out_pad = pl.pallas_call(
        mlp_kernel,
        out_shape=jax.ShapeDtypeStruct((batch_pad, n_out_pad), jnp.float32),
        grid=grid,
        in_specs=[
            pl.BlockSpec((tile_b, n_input), lambda i: (i, 0)),   # x tile
            w_spec((n_input, n_hidden)),                         # w1
            w_spec((1, n_hidden)),                               # b1
            w_spec((n_hidden, n_hidden)),                        # w2
            w_spec((1, n_hidden)),                               # b2
            w_spec((n_hidden, n_out_pad)),                       # w3
            w_spec((1, n_out_pad)),                              # b3
        ],
        out_specs=pl.BlockSpec((tile_b, n_out_pad), lambda i: (i, 0)),
        compiler_params=pltpu.CompilerParams(
            dimension_semantics=("parallel",),
            vmem_limit_bytes=vmem_limit_bytes,
        ),
        cost_estimate=cost,
    )(x_bf, w1, b1, w2, b2, w3, b3)

    return out_pad[:batch, :n_output]


def mlp_forward(x, params, *, tile_b=512):
    """Pallas MLP forward using parameters from prepare_params()."""
    batch = int(x.shape[0])
    tb = _choose_tile_b(batch, tile_b)
    vmem_limit = _pick_vmem_limit()
    last_err = None
    # Prefer single-buffered invariant weights; fall back to default
    # double-buffering if the installed Pallas rejects Buffered(1).
    for single_buf in (True, False):
        try:
            out = _mlp_forward_impl(
                x, params["w1"], params["b1"], params["w2"], params["b2"],
                params["w3"], params["b3"],
                tile_b=tb, n_output=params["n_output"],
                single_buffer_weights=single_buf,
                vmem_limit_bytes=vmem_limit)
            return jax.block_until_ready(out)
        except Exception as e:  # pragma: no cover - defensive fallback
            last_err = e
    raise last_err


def init_linear(key, n_in, n_out):
    """Deterministic init matching torch.nn.Linear's U(-1/sqrt(n_in), 1/sqrt(n_in))."""
    kw, kb = jax.random.split(key)
    bound = 1.0 / jnp.sqrt(jnp.float32(n_in))
    # Stored pre-transposed: (n_in, n_out) so the kernel computes x @ W.
    w = jax.random.uniform(kw, (n_in, n_out), jnp.float32, -bound, bound)
    b = jax.random.uniform(kb, (1, n_out), jnp.float32, -bound, bound)
    return w, b


def reference_forward(x, w1, b1, w2, b2, w3, b3):
    """Pure-JAX reference reproducing the kernel's bf16 quantization points."""
    q = lambda a: a.astype(jnp.bfloat16).astype(jnp.float32)
    h1 = jax.nn.sigmoid(q(x) @ q(w1) + b1)
    h2 = jax.nn.sigmoid(q(h1) @ q(w2) + b2)
    return q(h2) @ q(w3) + b3


if __name__ == "__main__":
    # Small shapes consistent with Network(n_input, n_hidden, n_output)
    batch, n_input, n_hidden, n_output = 8, 16, 32, 8

    key = jax.random.PRNGKey(0)
    kx, k1, k2, k3 = jax.random.split(key, 4)

    x = jax.random.normal(kx, (batch, n_input), jnp.float32)
    w1, b1 = init_linear(k1, n_input, n_hidden)
    w2, b2 = init_linear(k2, n_hidden, n_hidden)
    w3, b3 = init_linear(k3, n_hidden, n_output)

    params = prepare_params(w1, b1, w2, b2, w3, b3)   # one-time weight prep
    y = mlp_forward(x, params)
    y = jax.block_until_ready(y)

    y_ref = reference_forward(x, w1, b1, w2, b2, w3, b3)
    assert y.shape == (batch, n_output)
    assert jnp.allclose(y, y_ref, atol=1e-3, rtol=1e-3), (
        float(jnp.max(jnp.abs(y - y_ref))))

    print("KERNEL_OK")
</pallas_src>

<mosaic_0001>
module attributes {stable_mosaic.version = 11 : i64} {
  func.func @mlp_kernel(%arg0: i32, %arg1: memref<16x16xbf16, #tpu.memory_space<vmem>>, %arg2: memref<16x32xbf16, #tpu.memory_space<vmem>>, %arg3: memref<1x32xf32, #tpu.memory_space<vmem>>, %arg4: memref<32x32xbf16, #tpu.memory_space<vmem>>, %arg5: memref<1x32xf32, #tpu.memory_space<vmem>>, %arg6: memref<32x8xbf16, #tpu.memory_space<vmem>>, %arg7: memref<1x8xf32, #tpu.memory_space<vmem>>, %arg8: memref<16x8xf32, #tpu.memory_space<vmem>>) attributes {dimension_semantics = [#tpu.dimension_semantics<parallel>], iteration_bounds = array<i64: 1>, scalar_prefetch = 0 : i64, scratch_operands = 0 : i64, tpu.core_type = #tpu.core_type<tc>, window_params = [{transform_indices = @transform_0, window_bounds = array<i64: 16, 16>}, {pipeline_mode = #tpu.pipeline_mode<synchronous>, transform_indices = @transform_1, window_bounds = array<i64: 16, 32>}, {pipeline_mode = #tpu.pipeline_mode<synchronous>, transform_indices = @transform_2, window_bounds = array<i64: 1, 32>}, {pipeline_mode = #tpu.pipeline_mode<synchronous>, transform_indices = @transform_3, window_bounds = array<i64: 32, 32>}, {pipeline_mode = #tpu.pipeline_mode<synchronous>, transform_indices = @transform_4, window_bounds = array<i64: 1, 32>}, {pipeline_mode = #tpu.pipeline_mode<synchronous>, transform_indices = @transform_5, window_bounds = array<i64: 32, 8>}, {pipeline_mode = #tpu.pipeline_mode<synchronous>, transform_indices = @transform_6, window_bounds = array<i64: 1, 8>}, {transform_indices = @transform_7, window_bounds = array<i64: 16, 8>}]} {
    %c0 = arith.constant 0 : index
    %c0_0 = arith.constant 0 : index
    %0 = vector.load %arg1[%c0, %c0_0] : memref<16x16xbf16, #tpu.memory_space<vmem>>, vector<16x16xbf16>
    %c0_1 = arith.constant 0 : index
    %c0_2 = arith.constant 0 : index
    %1 = vector.load %arg2[%c0_1, %c0_2] : memref<16x32xbf16, #tpu.memory_space<vmem>>, vector<16x32xbf16>
    %cst = arith.constant dense<0.000000e+00> : vector<16x32xf32>
    %2 = tpu.matmul %0, %1, %cst {dimension_numbers = #tpu.dot_dimension_numbers<[1], [0], [0], [1], [0, 0, 1, 1], [], []>} : vector<16x16xbf16>, vector<16x32xbf16>, vector<16x32xf32> -> vector<16x32xf32>
    %c0_3 = arith.constant 0 : index
    %c0_4 = arith.constant 0 : index
    %3 = vector.load %arg3[%c0_3, %c0_4] : memref<1x32xf32, #tpu.memory_space<vmem>>, vector<1x32xf32>
    %4 = vector.broadcast %3 : vector<1x32xf32> to vector<16x32xf32>
    %5 = arith.addf %2, %4 : vector<16x32xf32>
    %6 = arith.negf %5 : vector<16x32xf32>
    %7 = math.exp %6 : vector<16x32xf32>
    %cst_5 = arith.constant 1.000000e+00 : f32
    %8 = vector.broadcast %cst_5 : f32 to vector<16x32xf32>
    %9 = arith.addf %8, %7 : vector<16x32xf32>
    %10 = arith.divf %8, %9 : vector<16x32xf32>
    %11 = arith.truncf %10 : vector<16x32xf32> to vector<16x32xbf16>
    %c0_6 = arith.constant 0 : index
    %c0_7 = arith.constant 0 : index
    %12 = vector.load %arg4[%c0_6, %c0_7] : memref<32x32xbf16, #tpu.memory_space<vmem>>, vector<32x32xbf16>
    %cst_8 = arith.constant dense<0.000000e+00> : vector<16x32xf32>
    %13 = tpu.matmul %11, %12, %cst_8 {dimension_numbers = #tpu.dot_dimension_numbers<[1], [0], [0], [1], [0, 0, 1, 1], [], []>} : vector<16x32xbf16>, vector<32x32xbf16>, vector<16x32xf32> -> vector<16x32xf32>
    %c0_9 = arith.constant 0 : index
    %c0_10 = arith.constant 0 : index
    %14 = vector.load %arg5[%c0_9, %c0_10] : memref<1x32xf32, #tpu.memory_space<vmem>>, vector<1x32xf32>
    %15 = vector.broadcast %14 : vector<1x32xf32> to vector<16x32xf32>
    %16 = arith.addf %13, %15 : vector<16x32xf32>
    %17 = arith.negf %16 : vector<16x32xf32>
    %18 = math.exp %17 : vector<16x32xf32>
    %cst_11 = arith.constant 1.000000e+00 : f32
    %19 = vector.broadcast %cst_11 : f32 to vector<16x32xf32>
    %20 = arith.addf %19, %18 : vector<16x32xf32>
    %21 = arith.divf %19, %20 : vector<16x32xf32>
    %22 = arith.truncf %21 : vector<16x32xf32> to vector<16x32xbf16>
    %c0_12 = arith.constant 0 : index
    %c0_13 = arith.constant 0 : index
    %23 = vector.load %arg6[%c0_12, %c0_13] : memref<32x8xbf16, #tpu.memory_space<vmem>>, vector<32x8xbf16>
    %cst_14 = arith.constant dense<0.000000e+00> : vector<16x8xf32>
    %24 = tpu.matmul %22, %23, %cst_14 {dimension_numbers = #tpu.dot_dimension_numbers<[1], [0], [0], [1], [0, 0, 1, 1], [], []>} : vector<16x32xbf16>, vector<32x8xbf16>, vector<16x8xf32> -> vector<16x8xf32>
    %c0_15 = arith.constant 0 : index
    %c0_16 = arith.constant 0 : index
    %25 = vector.load %arg7[%c0_15, %c0_16] : memref<1x8xf32, #tpu.memory_space<vmem>>, vector<1x8xf32>
    %26 = vector.broadcast %25 : vector<1x8xf32> to vector<16x8xf32>
    %27 = arith.addf %24, %26 : vector<16x8xf32>
    %c0_17 = arith.constant 0 : index
    %c0_18 = arith.constant 0 : index
    %28 = vector.load %arg8[%c0_17, %c0_18] : memref<16x8xf32, #tpu.memory_space<vmem>>, vector<16x8xf32>
    tpu.vector_store %arg8[%c0_17, %c0_18], %27 {strides = array<i32>} : memref<16x8xf32, #tpu.memory_space<vmem>>, vector<16x8xf32>,
    return
  }
  func.func @transform_0(%arg0: i32) -> (i32, i32) {
    %c0_i32 = arith.constant 0 : i32
    %c0_i32_0 = arith.constant 0 : i32
    return %arg0, %c0_i32 : i32, i32
  }
  func.func @transform_1(%arg0: i32) -> (i32, i32) {
    %c0_i32 = arith.constant 0 : i32
    %c0_i32_0 = arith.constant 0 : i32
    %c0_i32_1 = arith.constant 0 : i32
    return %c0_i32, %c0_i32_0 : i32, i32
  }
  func.func @transform_2(%arg0: i32) -> (i32, i32) {
    %c0_i32 = arith.constant 0 : i32
    %c0_i32_0 = arith.constant 0 : i32
    %c0_i32_1 = arith.constant 0 : i32
    return %c0_i32, %c0_i32_0 : i32, i32
  }
  func.func @transform_3(%arg0: i32) -> (i32, i32) {
    %c0_i32 = arith.constant 0 : i32
    %c0_i32_0 = arith.constant 0 : i32
    %c0_i32_1 = arith.constant 0 : i32
    return %c0_i32, %c0_i32_0 : i32, i32
  }
  func.func @transform_4(%arg0: i32) -> (i32, i32) {
    %c0_i32 = arith.constant 0 : i32
    %c0_i32_0 = arith.constant 0 : i32
    %c0_i32_1 = arith.constant 0 : i32
    return %c0_i32, %c0_i32_0 : i32, i32
  }
  func.func @transform_5(%arg0: i32) -> (i32, i32) {
    %c0_i32 = arith.constant 0 : i32
    %c0_i32_0 = arith.constant 0 : i32
    %c0_i32_1 = arith.constant 0 : i32
    return %c0_i32, %c0_i32_0 : i32, i32
  }
  func.func @transform_6(%arg0: i32) -> (i32, i32) {
    %c0_i32 = arith.constant 0 : i32
    %c0_i32_0 = arith.constant 0 : i32
    %c0_i32_1 = arith.constant 0 : i32
    return %c0_i32, %c0_i32_0 : i32, i32
  }
  func.func @transform_7(%arg0: i32) -> (i32, i32) {
    %c0_i32 = arith.constant 0 : i32
    %c0_i32_0 = arith.constant 0 : i32
    return %arg0, %c0_i32 : i32, i32
  }
}

module attributes {stable_mosaic.version = 11 : i64} {
  func.func @mlp_kernel(%arg0: i32, %arg1: memref<16x16xbf16, #tpu.memory_space<vmem>>, %arg2: memref<16x32xbf16, #tpu.memory_space<vmem>>, %arg3: memref<1x32xf32, #tpu.memory_space<vmem>>, %arg4: memref<32x32xbf16, #tpu.memory_space<vmem>>, %arg5: memref<1x32xf32, #tpu.memory_space<vmem>>, %arg6: memref<32x8xbf16, #tpu.memory_space<vmem>>, %arg7: memref<1x8xf32, #tpu.memory_space<vmem>>, %arg8: memref<16x8xf32, #tpu.memory_space<vmem>>) attributes {dimension_semantics = [#tpu.dimension_semantics<parallel>], iteration_bounds = array<i64: 1>, scalar_prefetch = 0 : i64, scratch_operands = 0 : i64, tpu.core_type = #tpu.core_type<tc>, window_params = [{transform_indices = @transform_0, window_bounds = array<i64: 16, 16>}, {pipeline_mode = #tpu.pipeline_mode<synchronous>, transform_indices = @transform_1, window_bounds = array<i64: 16, 32>}, {pipeline_mode = #tpu.pipeline_mode<synchronous>, transform_indices = @transform_2, window_bounds = array<i64: 1, 32>}, {pipeline_mode = #tpu.pipeline_mode<synchronous>, transform_indices = @transform_3, window_bounds = array<i64: 32, 32>}, {pipeline_mode = #tpu.pipeline_mode<synchronous>, transform_indices = @transform_4, window_bounds = array<i64: 1, 32>}, {pipeline_mode = #tpu.pipeline_mode<synchronous>, transform_indices = @transform_5, window_bounds = array<i64: 32, 8>}, {pipeline_mode = #tpu.pipeline_mode<synchronous>, transform_indices = @transform_6, window_bounds = array<i64: 1, 8>}, {transform_indices = @transform_7, window_bounds = array<i64: 16, 8>}]} {
    %c0 = arith.constant 0 : index
    %c0_0 = arith.constant 0 : index
    %0 = vector.load %arg1[%c0, %c0_0] : memref<16x16xbf16, #tpu.memory_space<vmem>>, vector<16x16xbf16>
    %c0_1 = arith.constant 0 : index
    %c0_2 = arith.constant 0 : index
    %1 = vector.load %arg2[%c0_1, %c0_2] : memref<16x32xbf16, #tpu.memory_space<vmem>>, vector<16x32xbf16>
    %cst = arith.constant dense<0.000000e+00> : vector<16x32xf32>
    %2 = tpu.matmul %0, %1, %cst {dimension_numbers = #tpu.dot_dimension_numbers<[1], [0], [0], [1], [0, 0, 1, 1], [], []>} : vector<16x16xbf16>, vector<16x32xbf16>, vector<16x32xf32> -> vector<16x32xf32>
    %c0_3 = arith.constant 0 : index
    %c0_4 = arith.constant 0 : index
    %3 = vector.load %arg3[%c0_3, %c0_4] : memref<1x32xf32, #tpu.memory_space<vmem>>, vector<1x32xf32>
    %4 = vector.broadcast %3 : vector<1x32xf32> to vector<16x32xf32>
    %5 = arith.addf %2, %4 : vector<16x32xf32>
    %6 = arith.negf %5 : vector<16x32xf32>
    %7 = math.exp %6 : vector<16x32xf32>
    %cst_5 = arith.constant 1.000000e+00 : f32
    %8 = vector.broadcast %cst_5 : f32 to vector<16x32xf32>
    %9 = arith.addf %8, %7 : vector<16x32xf32>
    %10 = arith.divf %8, %9 : vector<16x32xf32>
    %11 = arith.truncf %10 : vector<16x32xf32> to vector<16x32xbf16>
    %c0_6 = arith.constant 0 : index
    %c0_7 = arith.constant 0 : index
    %12 = vector.load %arg4[%c0_6, %c0_7] : memref<32x32xbf16, #tpu.memory_space<vmem>>, vector<32x32xbf16>
    %cst_8 = arith.constant dense<0.000000e+00> : vector<16x32xf32>
    %13 = tpu.matmul %11, %12, %cst_8 {dimension_numbers = #tpu.dot_dimension_numbers<[1], [0], [0], [1], [0, 0, 1, 1], [], []>} : vector<16x32xbf16>, vector<32x32xbf16>, vector<16x32xf32> -> vector<16x32xf32>
    %c0_9 = arith.constant 0 : index
    %c0_10 = arith.constant 0 : index
    %14 = vector.load %arg5[%c0_9, %c0_10] : memref<1x32xf32, #tpu.memory_space<vmem>>, vector<1x32xf32>
    %15 = vector.broadcast %14 : vector<1x32xf32> to vector<16x32xf32>
    %16 = arith.addf %13, %15 : vector<16x32xf32>
    %17 = arith.negf %16 : vector<16x32xf32>
    %18 = math.exp %17 : vector<16x32xf32>
    %cst_11 = arith.constant 1.000000e+00 : f32
    %19 = vector.broadcast %cst_11 : f32 to vector<16x32xf32>
    %20 = arith.addf %19, %18 : vector<16x32xf32>
    %21 = arith.divf %19, %20 : vector<16x32xf32>
    %22 = arith.truncf %21 : vector<16x32xf32> to vector<16x32xbf16>
    %c0_12 = arith.constant 0 : index
    %c0_13 = arith.constant 0 : index
    %23 = vector.load %arg6[%c0_12, %c0_13] : memref<32x8xbf16, #tpu.memory_space<vmem>>, vector<32x8xbf16>
    %cst_14 = arith.constant dense<0.000000e+00> : vector<16x8xf32>
    %24 = tpu.matmul %22, %23, %cst_14 {dimension_numbers = #tpu.dot_dimension_numbers<[1], [0], [0], [1], [0, 0, 1, 1], [], []>} : vector<16x32xbf16>, vector<32x8xbf16>, vector<16x8xf32> -> vector<16x8xf32>
    %c0_15 = arith.constant 0 : index
    %c0_16 = arith.constant 0 : index
    %25 = vector.load %arg7[%c0_15, %c0_16] : memref<1x8xf32, #tpu.memory_space<vmem>>, vector<1x8xf32>
    %26 = vector.broadcast %25 : vector<1x8xf32> to vector<16x8xf32>
    %27 = arith.addf %24, %26 : vector<16x8xf32>
    %c0_17 = arith.constant 0 : index
    %c0_18 = arith.constant 0 : index
    %28 = vector.load %arg8[%c0_17, %c0_18] : memref<16x8xf32, #tpu.memory_space<vmem>>, vector<16x8xf32>
    tpu.vector_store %arg8[%c0_17, %c0_18], %27 {strides = array<i32>} : memref<16x8xf32, #tpu.memory_space<vmem>>, vector<16x8xf32>,
    return
  }
  func.func @transform_0(%arg0: i32) -> (i32, i32) {
    %c0_i32 = arith.constant 0 : i32
    %c0_i32_0 = arith.constant 0 : i32
    return %arg0, %c0_i32 : i32, i32
  }
  func.func @transform_1(%arg0: i32) -> (i32, i32) {
    %c0_i32 = arith.constant 0 : i32
    %c0_i32_0 = arith.constant 0 : i32
    %c0_i32_1 = arith.constant 0 : i32
    return %c0_i32, %c0_i32_0 : i32, i32
  }
  func.func @transform_2(%arg0: i32) -> (i32, i32) {
    %c0_i32 = arith.constant 0 : i32
    %c0_i32_0 = arith.constant 0 : i32
    %c0_i32_1 = arith.constant 0 : i32
    return %c0_i32, %c0_i32_0 : i32, i32
  }
  func.func @transform_3(%arg0: i32) -> (i32, i32) {
    %c0_i32 = arith.constant 0 : i32
    %c0_i32_0 = arith.constant 0 : i32
    %c0_i32_1 = arith.constant 0 : i32
    return %c0_i32, %c0_i32_0 : i32, i32
  }
  func.func @transform_4(%arg0: i32) -> (i32, i32) {
    %c0_i32 = arith.constant 0 : i32
    %c0_i32_0 = arith.constant 0 : i32
    %c0_i32_1 = arith.constant 0 : i32
    return %c0_i32, %c0_i32_0 : i32, i32
  }
  func.func @transform_5(%arg0: i32) -> (i32, i32) {
    %c0_i32 = arith.constant 0 : i32
    %c0_i32_0 = arith.constant 0 : i32
    %c0_i32_1 = arith.constant 0 : i32
    return %c0_i32, %c0_i32_0 : i32, i32
  }
  func.func @transform_6(%arg0: i32) -> (i32, i32) {
    %c0_i32 = arith.constant 0 : i32
    %c0_i32_0 = arith.constant 0 : i32
    %c0_i32_1 = arith.constant 0 : i32
    return %c0_i32, %c0_i32_0 : i32, i32
  }
  func.func @transform_7(%arg0: i32) -> (i32, i32) {
    %c0_i32 = arith.constant 0 : i32
    %c0_i32_0 = arith.constant 0 : i32
    return %arg0, %c0_i32 : i32, i32
  }
}

</mosaic_0001>

<llo_original>
// kernel: _mlp_forward_impl.1
$region0: #{_mlp_forward_impl.1}
  #allocation0 [shape = 'u32[]', space=smem, size = 0x4, offset = 0x4, fixed_abs, tag = 'smem constant byte address 0x4 - core index']
  #allocation1 [shape = 'u32[144,128]{1,0:T(1,128)}', space=vmem, size = 0x12000, scoped, tag = 'internal scratch']
  %s0 = inlined_call_operand.vmem [shape: bf16[16,16], index: 0, kind: input, shape index: {}]
  %s1 = inlined_call_operand.vmem [shape: bf16[16,32], index: 1, kind: input, shape index: {}]
  %s2 = inlined_call_operand.vmem [shape: f32[1,32], index: 2, kind: input, shape index: {}]
  %s3 = inlined_call_operand.vmem [shape: bf16[32,32], index: 3, kind: input, shape index: {}]
  %s4 = inlined_call_operand.vmem [shape: f32[1,32], index: 4, kind: input, shape index: {}]
  %s5 = inlined_call_operand.vmem [shape: bf16[32,8], index: 5, kind: input, shape index: {}]
  %s6 = inlined_call_operand.vmem [shape: f32[1,8], index: 6, kind: input, shape index: {}]
  %s7 = inlined_call_operand.vmem [shape: f32[16,8], index: 7, kind: output, shape index: {}]
  %s8 = sld [smem:[#allocation0]]
  $region38: #{_mlp_forward_impl.1} parent=0
    _
  %s10 = ssub.s32 1, %s8
  %s11 = scalar_select 0, %s10, %s8
  // Predicated region
  $region2: #{_mlp_forward_impl.1} parent=0 // pred_check
    _
  $region3: #{_mlp_forward_impl.1} parent=0 // pred_check_branch
    %13 = sbr.rel (0) target = $region5
  $region4: #{_mlp_forward_impl.1} parent=0 // pred_region
    _
  $region5: #{_mlp_forward_impl.1} parent=0 // pred_fallthru
    _
  // Predicated region
  $region6: #{_mlp_forward_impl.1} parent=0 // pred_check
    _
  $region7: #{_mlp_forward_impl.1} parent=0 // pred_check_branch
    %15 = sbr.rel (0) target = $region9
  $region8: #{_mlp_forward_impl.1} parent=0 // pred_region
    _
  $region9: #{_mlp_forward_impl.1} parent=0 // pred_fallthru
    _
  // Predicated region
  $region10: #{_mlp_forward_impl.1} parent=0 // pred_check
    _
  $region11: #{_mlp_forward_impl.1} parent=0 // pred_check_branch
    %17 = sbr.rel (0) target = $region13
  $region12: #{_mlp_forward_impl.1} parent=0 // pred_region
    _
  $region13: #{_mlp_forward_impl.1} parent=0 // pred_fallthru
    _
  // Predicated region
  $region14: #{_mlp_forward_impl.1} parent=0 // pred_check
    _
  $region15: #{_mlp_forward_impl.1} parent=0 // pred_check_branch
    %19 = sbr.rel (0) target = $region17
  $region16: #{_mlp_forward_impl.1} parent=0 // pred_region
    _
  $region17: #{_mlp_forward_impl.1} parent=0 // pred_fallthru
    _
  // Predicated region
  $region18: #{_mlp_forward_impl.1} parent=0 // pred_check
    _
  $region19: #{_mlp_forward_impl.1} parent=0 // pred_check_branch
    %21 = sbr.rel (0) target = $region21
  $region20: #{_mlp_forward_impl.1} parent=0 // pred_region
    _
  $region21: #{_mlp_forward_impl.1} parent=0 // pred_fallthru
    _
  // Predicated region
  $region22: #{_mlp_forward_impl.1} parent=0 // pred_check
    _
  $region23: #{_mlp_forward_impl.1} parent=0 // pred_check_branch
    %23 = sbr.rel (0) target = $region25
  $region24: #{_mlp_forward_impl.1} parent=0 // pred_region
    _
  $region25: #{_mlp_forward_impl.1} parent=0 // pred_fallthru
    _
  // Predicated region
  $region26: #{_mlp_forward_impl.1} parent=0 // pred_check
    _
  $region27: #{_mlp_forward_impl.1} parent=0 // pred_check_branch
    %25 = sbr.rel (0) target = $region29
  $region28: #{_mlp_forward_impl.1} parent=0 // pred_region
    _
  $region29: #{_mlp_forward_impl.1} parent=0 // pred_fallthru
    _
  %v27 = vld [vmem:[%s0] sm:$0xf]
  %v28 = vld [vmem:[%s0 + $0x4] sm:$0xf]
  %v29 = vld [vmem:[%s1] sm:$0xf]
  %v30 = vld [vmem:[%s1 + $0x4] sm:$0xf]
  %v31 = vld [vmem:[%s2] sm:$0x1]
  %v33 = vlaneseq
  %v34 = vshrl.u32 %v33, 7
  %v35 = vsub.s32 0, %v34
  %v36 = vrot.slane %v31, %v35
  %v40 = vunpack.c.l.b16 %v27
  %v41 = vunpack.c.l.b16 %v28
  %v42 = vpack.c.b16 %v41, %v40
  %v45 = vunpack.c.l.b16 %v29
  %v46 = vunpack.c.l.b16 %v30
  %v47 = vpack.c.b16 %v46, %v45
  %vm49 = vcmask 130048
  %v51 = vsel %vm49, %v42, 0
  %53 = vmatprep.subr.bf16.mxu0 0
  %54 = vmatpush1.bf16.msra.mxu0 %v47
  %55 = vmatprep.subr.bf16.mxu0 0
  %56 = vmatpush1.bf16.msra.mxu0 0
  %57 = vmatprep.subr.bf16.mxu0 0
  %58 = vmatpush1.bf16.msra.mxu0 0
  %59 = vmatprep.subr.bf16.mxu0 0
  %60 = vmatpush1.bf16.msra.mxu0 0
  %61 = vmatprep.subr.bf16.mxu0 0
  %62 = vmatpush1.bf16.msra.mxu0 0
  %63 = vmatprep.subr.bf16.mxu0 0
  %64 = vmatpush1.bf16.msra.mxu0 0
  %65 = vmatprep.subr.bf16.mxu0 0
  %66 = vmatpush1.bf16.msra.mxu0 0
  %67 = vmatprep.subr.bf16.mxu0 0
  %68 = vmatpush1.bf16.msra.mxu0 0
  %69 = vmatprep.subr.bf16.mxu0 0
  %70 = vmatpush1.bf16.msra.mxu0 0
  %71 = vmatprep.subr.bf16.mxu0 0
  %72 = vmatpush1.bf16.msra.mxu0 0
  %73 = vmatprep.subr.bf16.mxu0 0
  %74 = vmatpush1.bf16.msra.mxu0 0
  %75 = vmatprep.subr.bf16.mxu0 0
  %76 = vmatpush1.bf16.msra.mxu0 0
  %77 = vmatprep.subr.bf16.mxu0 0
  %78 = vmatpush1.bf16.msra.mxu0 0
  %79 = vmatprep.subr.bf16.mxu0 0
  %80 = vmatpush1.bf16.msra.mxu0 0
  %81 = vmatprep.subr.bf16.mxu0 0
  %82 = vmatpush1.bf16.msra.mxu0 0
  %83 = vmatprep.subr.bf16.mxu0 0
  %84 = vmatpush1.bf16.msra.mxu0 0
  %85 = vmatprep.mubr.bf16.mxu0 0
  %86 = vmatmul.mubr.bf16.gmra.mrb[0].mxu0 %v51
  %v87 = vpop.f32.mrb[0].mxu0
  %v88 = vadd.f32 %v36, %v87
  %v89 = vpop.f32.mrb[0].mxu0
  %v90 = vpop.f32.mrb[0].mxu0
  %v91 = vadd.f32 %v36, %v90
  %v92 = vpop.f32.mrb[0].mxu0
  %93 = vdwg.mxu0
  %v94 = vxor.u32 %v88, 2147483648
  %v95 = vxor.u32 %v91, 2147483648
  %v96 = vmul.f32 %v94, 1.442695
  %v97 = vpow.pop %v96
  %v98 = vmul.f32 %v95, 1.442695
  %v99 = vpow.pop %v98
  %v100 = vadd.f32 %v97, 1.0
  %v101 = vadd.f32 %v99, 1.0
  %v102 = vrcp.pop %v100
  %v103 = vmul.f32 1.0, %v102
  %v104 = vrcp.pop %v101
  %v105 = vmul.f32 1.0, %v104
  %v106 = vpack.c.bf16 %v105, %v103
  %v107 = vld [vmem:[%s3] sm:$0xf]
  %v108 = vld [vmem:[%s3 + $0x4] sm:$0xf]
  %v109 = vld [vmem:[%s3 + $0x8] sm:$0xf]
  %v110 = vld [vmem:[%s3 + $0xc] sm:$0xf]
  %v111 = vld [vmem:[%s4] sm:$0x1]
  %v113 = vlaneseq
  %v114 = vshrl.u32 %v113, 7
  %v115 = vsub.s32 0, %v114
  %v116 = vrot.slane %v111, %v115
  %v122 = vunpack.c.l.b16 %v107
  %v123 = vunpack.c.l.b16 %v108
  %v124 = vunpack.c.l.b16 %v109
  %v125 = vunpack.c.l.b16 %v110
  %v126 = vpack.c.b16 %v123, %v122
  %v127 = vpack.c.b16 %v125, %v124
  %vm130 = vcmask 261120
  %v132 = vsel %vm130, %v106, 0
  %134 = vmatprep.subr.bf16.mxu0 0
  %135 = vmatpush1.bf16.msra.mxu0 %v126
  %136 = vmatprep.subr.bf16.mxu0 0
  %137 = vmatpush1.bf16.msra.mxu0 %v127
  %138 = vmatprep.subr.bf16.mxu0 0
  %139 = vmatpush1.bf16.msra.mxu0 0
  %140 = vmatprep.subr.bf16.mxu0 0
  %141 = vmatpush1.bf16.msra.mxu0 0
  %142 = vmatprep.subr.bf16.mxu0 0
  %143 = vmatpush1.bf16.msra.mxu0 0
  %144 = vmatprep.subr.bf16.mxu0 0
  %145 = vmatpush1.bf16.msra.mxu0 0
  %146 = vmatprep.subr.bf16.mxu0 0
  %147 = vmatpush1.bf16.msra.mxu0 0
  %148 = vmatprep.subr.bf16.mxu0 0
  %149 = vmatpush1.bf16.msra.mxu0 0
  %150 = vmatprep.subr.bf16.mxu0 0
  %151 = vmatpush1.bf16.msra.mxu0 0
  %152 = vmatprep.subr.bf16.mxu0 0
  %153 = vmatpush1.bf16.msra.mxu0 0
  %154 = vmatprep.subr.bf16.mxu0 0
  %155 = vmatpush1.bf16.msra.mxu0 0
  %156 = vmatprep.subr.bf16.mxu0 0
  %157 = vmatpush1.bf16.msra.mxu0 0
  %158 = vmatprep.subr.bf16.mxu0 0
  %159 = vmatpush1.bf16.msra.mxu0 0
  %160 = vmatprep.subr.bf16.mxu0 0
  %161 = vmatpush1.bf16.msra.mxu0 0
  %162 = vmatprep.subr.bf16.mxu0 0
  %163 = vmatpush1.bf16.msra.mxu0 0
  %164 = vmatprep.subr.bf16.mxu0 0
  %165 = vmatpush1.bf16.msra.mxu0 0
  %166 = vmatprep.mubr.bf16.mxu0 0
  %167 = vmatmul.mubr.bf16.gmra.mrb[0].mxu0 %v132
  %v168 = vpop.f32.mrb[0].mxu0
  %v169 = vadd.f32 %v116, %v168
  %v170 = vpop.f32.mrb[0].mxu0
  %v171 = vpop.f32.mrb[0].mxu0
  %v172 = vadd.f32 %v116, %v171
  %v173 = vpop.f32.mrb[0].mxu0
  %174 = vdwg.mxu0
  %v175 = vxor.u32 %v169, 2147483648
  %v176 = vxor.u32 %v172, 2147483648
  %v177 = vmul.f32 %v175, 1.442695
  %v178 = vpow.pop %v177
  %v179 = vmul.f32 %v176, 1.442695
  %v180 = vpow.pop %v179
  %v181 = vadd.f32 %v178, 1.0
  %v182 = vadd.f32 %v180, 1.0
  %v183 = vrcp.pop %v181
  %v184 = vmul.f32 1.0, %v183
  %v185 = vrcp.pop %v182
  %v186 = vmul.f32 1.0, %v185
  %v187 = vpack.c.bf16 %v186, %v184
  %v188 = vld [vmem:[%s5] sm:$0xf]
  %v189 = vld [vmem:[%s5 + $0x4] sm:$0xf]
  %v190 = vld [vmem:[%s5 + $0x8] sm:$0xf]
  %v191 = vld [vmem:[%s5 + $0xc] sm:$0xf]
  %v192 = vld [vmem:[%s6] sm:$0x1]
  %v194 = vlaneseq
  %v195 = vshrl.u32 %v194, 7
  %v196 = vsub.s32 0, %v195
  %v197 = vrot.slane %v192, %v196
  %v203 = vunpack.c.l.b16 %v188
  %v204 = vunpack.c.l.b16 %v189
  %v205 = vunpack.c.l.b16 %v190
  %v206 = vunpack.c.l.b16 %v191
  %v207 = vpack.c.b16 %v204, %v203
  %v208 = vpack.c.b16 %v206, %v205
  %v212 = vsel %vm130, %v187, 0
  %214 = vmatprep.subr.bf16.mxu0 0
  %215 = vmatpush1.bf16.msra.mxu0 %v207
  %216 = vmatprep.subr.bf16.mxu0 0
  %217 = vmatpush1.bf16.msra.mxu0 %v208
  %218 = vmatprep.subr.bf16.mxu0 0
  %219 = vmatpush1.bf16.msra.mxu0 0
  %220 = vmatprep.subr.bf16.mxu0 0
  %221 = vmatpush1.bf16.msra.mxu0 0
  %222 = vmatprep.subr.bf16.mxu0 0
  %223 = vmatpush1.bf16.msra.mxu0 0
  %224 = vmatprep.subr.bf16.mxu0 0
  %225 = vmatpush1.bf16.msra.mxu0 0
  %226 = vmatprep.subr.bf16.mxu0 0
  %227 = vmatpush1.bf16.msra.mxu0 0
  %228 = vmatprep.subr.bf16.mxu0 0
  %229 = vmatpush1.bf16.msra.mxu0 0
  %230 = vmatprep.subr.bf16.mxu0 0
  %231 = vmatpush1.bf16.msra.mxu0 0
  %232 = vmatprep.subr.bf16.mxu0 0
  %233 = vmatpush1.bf16.msra.mxu0 0
  %234 = vmatprep.subr.bf16.mxu0 0
  %235 = vmatpush1.bf16.msra.mxu0 0
  %236 = vmatprep.subr.bf16.mxu0 0
  %237 = vmatpush1.bf16.msra.mxu0 0
  %238 = vmatprep.subr.bf16.mxu0 0
  %239 = vmatpush1.bf16.msra.mxu0 0
  %240 = vmatprep.subr.bf16.mxu0 0
  %241 = vmatpush1.bf16.msra.mxu0 0
  %242 = vmatprep.subr.bf16.mxu0 0
  %243 = vmatpush1.bf16.msra.mxu0 0
  %244 = vmatprep.subr.bf16.mxu0 0
  %245 = vmatpush1.bf16.msra.mxu0 0
  %246 = vmatprep.mubr.bf16.mxu0 0
  %247 = vmatmul.mubr.bf16.gmra.mrb[0].mxu0 %v212
  %v248 = vpop.f32.mrb[0].mxu0
  %v249 = vadd.f32 %v197, %v248
  %v250 = vpop.f32.mrb[0].mxu0
  %v251 = vpop.f32.mrb[0].mxu0
  %v252 = vadd.f32 %v197, %v251
  %v253 = vpop.f32.mrb[0].mxu0
  %254 = vdwg.mxu0
  %vm255 = vcmask 64512
  %256 = vst.msk [vmem:[%s7] sm:$0xff] %vm255, %v249
  %257 = vst.msk [vmem:[%s7 + $0x8] sm:$0xff] %vm255, %v252
  // Predicated region
  $region30: #{_mlp_forward_impl.1} parent=0 // pred_check
    _
  $region31: #{_mlp_forward_impl.1} parent=0 // pred_check_branch
    %259 = sbr.rel (0) target = $region33
  $region32: #{_mlp_forward_impl.1} parent=0 // pred_region
    _
  $region33: #{_mlp_forward_impl.1} parent=0 // pred_fallthru
    _
  // Predicated region
  $region34: #{_mlp_forward_impl.1} parent=0 // pred_check
    _
  $region35: #{_mlp_forward_impl.1} parent=0 // pred_check_branch
    %261 = sbr.rel (0) target = $region37
  $region36: #{_mlp_forward_impl.1} parent=0 // pred_region
    _
  $region37: #{_mlp_forward_impl.1} parent=0 // pred_fallthru
    _

// kernel: _mlp_forward_impl.1
$region0: #{_mlp_forward_impl.1}
  #allocation0 [shape = 'u32[]', space=smem, size = 0x4, offset = 0x4, fixed_abs, tag = 'smem constant byte address 0x4 - core index']
  #allocation1 [shape = 'u32[144,128]{1,0:T(1,128)}', space=vmem, size = 0x12000, scoped, tag = 'internal scratch']
  %s0 = inlined_call_operand.vmem [shape: bf16[16,16], index: 0, kind: input, shape index: {}]
  %s1 = inlined_call_operand.vmem [shape: bf16[16,32], index: 1, kind: input, shape index: {}]
  %s2 = inlined_call_operand.vmem [shape: f32[1,32], index: 2, kind: input, shape index: {}]
  %s3 = inlined_call_operand.vmem [shape: bf16[32,32], index: 3, kind: input, shape index: {}]
  %s4 = inlined_call_operand.vmem [shape: f32[1,32], index: 4, kind: input, shape index: {}]
  %s5 = inlined_call_operand.vmem [shape: bf16[32,8], index: 5, kind: input, shape index: {}]
  %s6 = inlined_call_operand.vmem [shape: f32[1,8], index: 6, kind: input, shape index: {}]
  %s7 = inlined_call_operand.vmem [shape: f32[16,8], index: 7, kind: output, shape index: {}]
  %s8 = sld [smem:[#allocation0]]
  $region38: #{_mlp_forward_impl.1} parent=0
    _
  %s10 = ssub.s32 1, %s8
  %s11 = scalar_select 0, %s10, %s8
  // Predicated region
  $region2: #{_mlp_forward_impl.1} parent=0 // pred_check
    _
  $region3: #{_mlp_forward_impl.1} parent=0 // pred_check_branch
    %13 = sbr.rel (0) target = $region5
  $region4: #{_mlp_forward_impl.1} parent=0 // pred_region
    _
  $region5: #{_mlp_forward_impl.1} parent=0 // pred_fallthru
    _
  // Predicated region
  $region6: #{_mlp_forward_impl.1} parent=0 // pred_check
    _
  $region7: #{_mlp_forward_impl.1} parent=0 // pred_check_branch
    %15 = sbr.rel (0) target = $region9
  $region8: #{_mlp_forward_impl.1} parent=0 // pred_region
    _
  $region9: #{_mlp_forward_impl.1} parent=0 // pred_fallthru
    _
  // Predicated region
  $region10: #{_mlp_forward_impl.1} parent=0 // pred_check
    _
  $region11: #{_mlp_forward_impl.1} parent=0 // pred_check_branch
    %17 = sbr.rel (0) target = $region13
  $region12: #{_mlp_forward_impl.1} parent=0 // pred_region
    _
  $region13: #{_mlp_forward_impl.1} parent=0 // pred_fallthru
    _
  // Predicated region
  $region14: #{_mlp_forward_impl.1} parent=0 // pred_check
    _
  $region15: #{_mlp_forward_impl.1} parent=0 // pred_check_branch
    %19 = sbr.rel (0) target = $region17
  $region16: #{_mlp_forward_impl.1} parent=0 // pred_region
    _
  $region17: #{_mlp_forward_impl.1} parent=0 // pred_fallthru
    _
  // Predicated region
  $region18: #{_mlp_forward_impl.1} parent=0 // pred_check
    _
  $region19: #{_mlp_forward_impl.1} parent=0 // pred_check_branch
    %21 = sbr.rel (0) target = $region21
  $region20: #{_mlp_forward_impl.1} parent=0 // pred_region
    _
  $region21: #{_mlp_forward_impl.1} parent=0 // pred_fallthru
    _
  // Predicated region
  $region22: #{_mlp_forward_impl.1} parent=0 // pred_check
    _
  $region23: #{_mlp_forward_impl.1} parent=0 // pred_check_branch
    %23 = sbr.rel (0) target = $region25
  $region24: #{_mlp_forward_impl.1} parent=0 // pred_region
    _
  $region25: #{_mlp_forward_impl.1} parent=0 // pred_fallthru
    _
  // Predicated region
  $region26: #{_mlp_forward_impl.1} parent=0 // pred_check
    _
  $region27: #{_mlp_forward_impl.1} parent=0 // pred_check_branch
    %25 = sbr.rel (0) target = $region29
  $region28: #{_mlp_forward_impl.1} parent=0 // pred_region
    _
  $region29: #{_mlp_forward_impl.1} parent=0 // pred_fallthru
    _
  %v27 = vld [vmem:[%s0] sm:$0xf]
  %v28 = vld [vmem:[%s0 + $0x4] sm:$0xf]
  %v29 = vld [vmem:[%s1] sm:$0xf]
  %v30 = vld [vmem:[%s1 + $0x4] sm:$0xf]
  %v31 = vld [vmem:[%s2] sm:$0x1]
  %v33 = vlaneseq
  %v34 = vshrl.u32 %v33, 7
  %v35 = vsub.s32 0, %v34
  %v36 = vrot.slane %v31, %v35
  %v40 = vunpack.c.l.b16 %v27
  %v41 = vunpack.c.l.b16 %v28
  %v42 = vpack.c.b16 %v41, %v40
  %v45 = vunpack.c.l.b16 %v29
  %v46 = vunpack.c.l.b16 %v30
  %v47 = vpack.c.b16 %v46, %v45
  %vm49 = vcmask 130048
  %v51 = vsel %vm49, %v42, 0
  %53 = vmatprep.subr.bf16.mxu0 0
  %54 = vmatpush1.bf16.msra.mxu0 %v47
  %55 = vmatprep.subr.bf16.mxu0 0
  %56 = vmatpush1.bf16.msra.mxu0 0
  %57 = vmatprep.subr.bf16.mxu0 0
  %58 = vmatpush1.bf16.msra.mxu0 0
  %59 = vmatprep.subr.bf16.mxu0 0
  %60 = vmatpush1.bf16.msra.mxu0 0
  %61 = vmatprep.subr.bf16.mxu0 0
  %62 = vmatpush1.bf16.msra.mxu0 0
  %63 = vmatprep.subr.bf16.mxu0 0
  %64 = vmatpush1.bf16.msra.mxu0 0
  %65 = vmatprep.subr.bf16.mxu0 0
  %66 = vmatpush1.bf16.msra.mxu0 0
  %67 = vmatprep.subr.bf16.mxu0 0
  %68 = vmatpush1.bf16.msra.mxu0 0
  %69 = vmatprep.subr.bf16.mxu0 0
  %70 = vmatpush1.bf16.msra.mxu0 0
  %71 = vmatprep.subr.bf16.mxu0 0
  %72 = vmatpush1.bf16.msra.mxu0 0
  %73 = vmatprep.subr.bf16.mxu0 0
  %74 = vmatpush1.bf16.msra.mxu0 0
  %75 = vmatprep.subr.bf16.mxu0 0
  %76 = vmatpush1.bf16.msra.mxu0 0
  %77 = vmatprep.subr.bf16.mxu0 0
  %78 = vmatpush1.bf16.msra.mxu0 0
  %79 = vmatprep.subr.bf16.mxu0 0
  %80 = vmatpush1.bf16.msra.mxu0 0
  %81 = vmatprep.subr.bf16.mxu0 0
  %82 = vmatpush1.bf16.msra.mxu0 0
  %83 = vmatprep.subr.bf16.mxu0 0
  %84 = vmatpush1.bf16.msra.mxu0 0
  %85 = vmatprep.mubr.bf16.mxu0 0
  %86 = vmatmul.mubr.bf16.gmra.mrb[0].mxu0 %v51
  %v87 = vpop.f32.mrb[0].mxu0
  %v88 = vadd.f32 %v36, %v87
  %v89 = vpop.f32.mrb[0].mxu0
  %v90 = vpop.f32.mrb[0].mxu0
  %v91 = vadd.f32 %v36, %v90
  %v92 = vpop.f32.mrb[0].mxu0
  %93 = vdwg.mxu0
  %v94 = vxor.u32 %v88, 2147483648
  %v95 = vxor.u32 %v91, 2147483648
  %v96 = vmul.f32 %v94, 1.442695
  %v97 = vpow.pop %v96
  %v98 = vmul.f32 %v95, 1.442695
  %v99 = vpow.pop %v98
  %v100 = vadd.f32 %v97, 1.0
  %v101 = vadd.f32 %v99, 1.0
  %v102 = vrcp.pop %v100
  %v103 = vmul.f32 1.0, %v102
  %v104 = vrcp.pop %v101
  %v105 = vmul.f32 1.0, %v104
  %v106 = vpack.c.bf16 %v105, %v103
  %v107 = vld [vmem:[%s3] sm:$0xf]
  %v108 = vld [vmem:[%s3 + $0x4] sm:$0xf]
  %v109 = vld [vmem:[%s3 + $0x8] sm:$0xf]
  %v110 = vld [vmem:[%s3 + $0xc] sm:$0xf]
  %v111 = vld [vmem:[%s4] sm:$0x1]
  %v113 = vlaneseq
  %v114 = vshrl.u32 %v113, 7
  %v115 = vsub.s32 0, %v114
  %v116 = vrot.slane %v111, %v115
  %v122 = vunpack.c.l.b16 %v107
  %v123 = vunpack.c.l.b16 %v108
  %v124 = vunpack.c.l.b16 %v109
  %v125 = vunpack.c.l.b16 %v110
  %v126 = vpack.c.b16 %v123, %v122
  %v127 = vpack.c.b16 %v125, %v124
  %vm130 = vcmask 261120
  %v132 = vsel %vm130, %v106, 0
  %134 = vmatprep.subr.bf16.mxu0 0
  %135 = vmatpush1.bf16.msra.mxu0 %v126
  %136 = vmatprep.subr.bf16.mxu0 0
  %137 = vmatpush1.bf16.msra.mxu0 %v127
  %138 = vmatprep.subr.bf16.mxu0 0
  %139 = vmatpush1.bf16.msra.mxu0 0
  %140 = vmatprep.subr.bf16.mxu0 0
  %141 = vmatpush1.bf16.msra.mxu0 0
  %142 = vmatprep.subr.bf16.mxu0 0
  %143 = vmatpush1.bf16.msra.mxu0 0
  %144 = vmatprep.subr.bf16.mxu0 0
  %145 = vmatpush1.bf16.msra.mxu0 0
  %146 = vmatprep.subr.bf16.mxu0 0
  %147 = vmatpush1.bf16.msra.mxu0 0
  %148 = vmatprep.subr.bf16.mxu0 0
  %149 = vmatpush1.bf16.msra.mxu0 0
  %150 = vmatprep.subr.bf16.mxu0 0
  %151 = vmatpush1.bf16.msra.mxu0 0
  %152 = vmatprep.subr.bf16.mxu0 0
  %153 = vmatpush1.bf16.msra.mxu0 0
  %154 = vmatprep.subr.bf16.mxu0 0
  %155 = vmatpush1.bf16.msra.mxu0 0
  %156 = vmatprep.subr.bf16.mxu0 0
  %157 = vmatpush1.bf16.msra.mxu0 0
  %158 = vmatprep.subr.bf16.mxu0 0
  %159 = vmatpush1.bf16.msra.mxu0 0
  %160 = vmatprep.subr.bf16.mxu0 0
  %161 = vmatpush1.bf16.msra.mxu0 0
  %162 = vmatprep.subr.bf16.mxu0 0
  %163 = vmatpush1.bf16.msra.mxu0 0
  %164 = vmatprep.subr.bf16.mxu0 0
  %165 = vmatpush1.bf16.msra.mxu0 0
  %166 = vmatprep.mubr.bf16.mxu0 0
  %167 = vmatmul.mubr.bf16.gmra.mrb[0].mxu0 %v132
  %v168 = vpop.f32.mrb[0].mxu0
  %v169 = vadd.f32 %v116, %v168
  %v170 = vpop.f32.mrb[0].mxu0
  %v171 = vpop.f32.mrb[0].mxu0
  %v172 = vadd.f32 %v116, %v171
  %v173 = vpop.f32.mrb[0].mxu0
  %174 = vdwg.mxu0
  %v175 = vxor.u32 %v169, 2147483648
  %v176 = vxor.u32 %v172, 2147483648
  %v177 = vmul.f32 %v175, 1.442695
  %v178 = vpow.pop %v177
  %v179 = vmul.f32 %v176, 1.442695
  %v180 = vpow.pop %v179
  %v181 = vadd.f32 %v178, 1.0
  %v182 = vadd.f32 %v180, 1.0
  %v183 = vrcp.pop %v181
  %v184 = vmul.f32 1.0, %v183
  %v185 = vrcp.pop %v182
  %v186 = vmul.f32 1.0, %v185
  %v187 = vpack.c.bf16 %v186, %v184
  %v188 = vld [vmem:[%s5] sm:$0xf]
  %v189 = vld [vmem:[%s5 + $0x4] sm:$0xf]
  %v190 = vld [vmem:[%s5 + $0x8] sm:$0xf]
  %v191 = vld [vmem:[%s5 + $0xc] sm:$0xf]
  %v192 = vld [vmem:[%s6] sm:$0x1]
  %v194 = vlaneseq
  %v195 = vshrl.u32 %v194, 7
  %v196 = vsub.s32 0, %v195
  %v197 = vrot.slane %v192, %v196
  %v203 = vunpack.c.l.b16 %v188
  %v204 = vunpack.c.l.b16 %v189
  %v205 = vunpack.c.l.b16 %v190
  %v206 = vunpack.c.l.b16 %v191
  %v207 = vpack.c.b16 %v204, %v203
  %v208 = vpack.c.b16 %v206, %v205
  %v212 = vsel %vm130, %v187, 0
  %214 = vmatprep.subr.bf16.mxu0 0
  %215 = vmatpush1.bf16.msra.mxu0 %v207
  %216 = vmatprep.subr.bf16.mxu0 0
  %217 = vmatpush1.bf16.msra.mxu0 %v208
  %218 = vmatprep.subr.bf16.mxu0 0
  %219 = vmatpush1.bf16.msra.mxu0 0
  %220 = vmatprep.subr.bf16.mxu0 0
  %221 = vmatpush1.bf16.msra.mxu0 0
  %222 = vmatprep.subr.bf16.mxu0 0
  %223 = vmatpush1.bf16.msra.mxu0 0
  %224 = vmatprep.subr.bf16.mxu0 0
  %225 = vmatpush1.bf16.msra.mxu0 0
  %226 = vmatprep.subr.bf16.mxu0 0
  %227 = vmatpush1.bf16.msra.mxu0 0
  %228 = vmatprep.subr.bf16.mxu0 0
  %229 = vmatpush1.bf16.msra.mxu0 0
  %230 = vmatprep.subr.bf16.mxu0 0
  %231 = vmatpush1.bf16.msra.mxu0 0
  %232 = vmatprep.subr.bf16.mxu0 0
  %233 = vmatpush1.bf16.msra.mxu0 0
  %234 = vmatprep.subr.bf16.mxu0 0
  %235 = vmatpush1.bf16.msra.mxu0 0
  %236 = vmatprep.subr.bf16.mxu0 0
  %237 = vmatpush1.bf16.msra.mxu0 0
  %238 = vmatprep.subr.bf16.mxu0 0
  %239 = vmatpush1.bf16.msra.mxu0 0
  %240 = vmatprep.subr.bf16.mxu0 0
  %241 = vmatpush1.bf16.msra.mxu0 0
  %242 = vmatprep.subr.bf16.mxu0 0
  %243 = vmatpush1.bf16.msra.mxu0 0
  %244 = vmatprep.subr.bf16.mxu0 0
  %245 = vmatpush1.bf16.msra.mxu0 0
  %246 = vmatprep.mubr.bf16.mxu0 0
  %247 = vmatmul.mubr.bf16.gmra.mrb[0].mxu0 %v212
  %v248 = vpop.f32.mrb[0].mxu0
  %v249 = vadd.f32 %v197, %v248
  %v250 = vpop.f32.mrb[0].mxu0
  %v251 = vpop.f32.mrb[0].mxu0
  %v252 = vadd.f32 %v197, %v251
  %v253 = vpop.f32.mrb[0].mxu0
  %254 = vdwg.mxu0
  %vm255 = vcmask 64512
  %256 = vst.msk [vmem:[%s7] sm:$0xff] %vm255, %v249
  %257 = vst.msk [vmem:[%s7 + $0x8] sm:$0xff] %vm255, %v252
  // Predicated region
  $region30: #{_mlp_forward_impl.1} parent=0 // pred_check
    _
  $region31: #{_mlp_forward_impl.1} parent=0 // pred_check_branch
    %259 = sbr.rel (0) target = $region33
  $region32: #{_mlp_forward_impl.1} parent=0 // pred_region
    _
  $region33: #{_mlp_forward_impl.1} parent=0 // pred_fallthru
    _
  // Predicated region
  $region34: #{_mlp_forward_impl.1} parent=0 // pred_check
    _
  $region35: #{_mlp_forward_impl.1} parent=0 // pred_check_branch
    %261 = sbr.rel (0) target = $region37
  $region36: #{_mlp_forward_impl.1} parent=0 // pred_region
    _
  $region37: #{_mlp_forward_impl.1} parent=0 // pred_fallthru
    _

</llo_original>
